<compile_context>
chip_gen: v6e
topology: v6e:2x2x1
jax: 0.10.0
libtpu: 0.0.40
codegen_flags: <defaults>
</compile_context>

<pallas_src>
import jax
import jax.numpy as jnp
from jax import lax
from jax.experimental import pallas as pl
from jax.experimental.pallas import tpu as pltpu


def _cosine_distance_kernel(x1_ref, x2_ref, inv1_ref, inv2_ref, o_ref):
    # x1_ref: (bm, D)  x2_ref: (bn, D)  inv1_ref: (bm, 1)  inv2_ref: (1, bn)
    # Single MXU contraction over the full hidden dim, f32 accumulation.
    dots = lax.dot_general(
        x1_ref[...], x2_ref[...],
        dimension_numbers=(((1,), (1,)), ((), ())),
        preferred_element_type=jnp.float32)                      # (bm, bn) f32

    # Post-scale epilogue: fold both row normalizations into the f32 result.
    cos = dots * inv1_ref[...] * inv2_ref[...]                   # (bm, bn)
    o_ref[...] = ((1.0 - cos) * 0.5).astype(o_ref.dtype)


def _round_up(x: int, m: int) -> int:
    return ((x + m - 1) // m) * m


def _vmem_bytes(bm: int, bn: int, d: int, in_itemsize: int, out_itemsize: int) -> int:
    # Double-buffered input blocks + double-buffered output block + inv-norm blocks.
    return (2 * (bm + bn) * d * in_itemsize
            + 2 * bm * bn * out_itemsize
            + 2 * (bm + bn + 2) * 4)


def cosine_distance(x1, x2, *, bm=512, bn=256, eps=1e-8):
    """(1 - cosine_similarity(x1, x2)) / 2   with x1: (M, D), x2: (N, D)."""
    M, D = x1.shape
    N, D2 = x2.shape
    assert D == D2, "hidden dims must match"

    in_itemsize = jnp.dtype(x1.dtype).itemsize
    out_itemsize = in_itemsize

    # Tile sizes: sublane-aligned bm, lane-dense (128-multiple) bn.
    bm_eff = min(bm, _round_up(M, 8))
    bn_eff = min(bn, _round_up(N, 128))

    # Shrink tiles until the double-buffered working set fits a v7x-safe budget
    # (64 MiB physical per TensorCore; leave headroom for compiler scratch).
    VMEM_BUDGET = 48 << 20
    while bm_eff > 8 and _vmem_bytes(bm_eff, bn_eff, D, in_itemsize, out_itemsize) > VMEM_BUDGET:
        bm_eff = max(8, _round_up(bm_eff // 2, 8))
    while bn_eff > 128 and _vmem_bytes(bm_eff, bn_eff, D, in_itemsize, out_itemsize) > VMEM_BUDGET:
        bn_eff = max(128, _round_up(bn_eff // 2, 128))

    M_pad = _round_up(M, bm_eff)
    N_pad = _round_up(N, bn_eff)

    x1p = jnp.pad(x1, ((0, M_pad - M), (0, 0))) if M_pad != M else x1
    x2p = jnp.pad(x2, ((0, N_pad - N), (0, 0))) if N_pad != N else x2

    # Inverse row norms, hoisted out of the grid: f32 accumulation + eps clamp
    # (zero / padded rows stay finite; real rows are unchanged).
    x1f = x1p.astype(jnp.float32)
    x2f = x2p.astype(jnp.float32)
    inv1 = lax.rsqrt(jnp.maximum(jnp.sum(x1f * x1f, axis=1, keepdims=True),
                                 eps * eps))                       # (M_pad, 1)
    inv2 = lax.rsqrt(jnp.maximum(jnp.sum(x2f * x2f, axis=1, keepdims=True),
                                 eps * eps)).T                     # (1, N_pad)

    grid = (M_pad // bm_eff, N_pad // bn_eff)   # j last: x1 block held across j

    vmem_need = _vmem_bytes(bm_eff, bn_eff, D, in_itemsize, out_itemsize)
    vmem_limit = int(min(max(vmem_need + (8 << 20), 32 << 20), 56 << 20))

    flops = 2 * M_pad * N_pad * D
    bytes_accessed = ((M_pad * D + grid[0] * N_pad * D) * in_itemsize
                      + M_pad * N_pad * out_itemsize
                      + (M_pad + N_pad) * 4)

    out = pl.pallas_call(
        _cosine_distance_kernel,
        out_shape=jax.ShapeDtypeStruct((M_pad, N_pad), x1.dtype),
        grid_spec=pltpu.PrefetchScalarGridSpec(
            num_scalar_prefetch=0,
            grid=grid,
            in_specs=[
                pl.BlockSpec((bm_eff, D), lambda i, j: (i, 0)),
                pl.BlockSpec((bn_eff, D), lambda i, j: (j, 0)),
                pl.BlockSpec((bm_eff, 1), lambda i, j: (i, 0)),
                pl.BlockSpec((1, bn_eff), lambda i, j: (0, j)),
            ],
            out_specs=pl.BlockSpec((bm_eff, bn_eff), lambda i, j: (i, j)),
        ),
        compiler_params=pltpu.CompilerParams(
            dimension_semantics=("parallel", "parallel"),
            vmem_limit_bytes=vmem_limit),
        cost_estimate=pl.CostEstimate(
            flops=flops, transcendentals=0, bytes_accessed=bytes_accessed),
    )(x1p, x2p, inv1, inv2)

    if M_pad != M or N_pad != N:
        out = out[:M, :N]
    return out


if __name__ == "__main__":
    key = jax.random.PRNGKey(0)
    k1, k2 = jax.random.split(key)

    M, N, D = 8, 16, 32
    x1 = jax.random.normal(k1, (M, D), dtype=jnp.float32)
    x2 = jax.random.normal(k2, (N, D), dtype=jnp.float32)

    out = cosine_distance(x1, x2)
    out = jax.block_until_ready(out)

    # Pure-JAX reference mirroring the PyTorch module exactly.
    x1n = x1 / jnp.linalg.norm(x1, axis=1, keepdims=True)
    x2n = x2 / jnp.linalg.norm(x2, axis=1, keepdims=True)
    ref = (1.0 - x1n @ x2n.T) / 2.0

    assert out.shape == (M, N)
    assert jnp.allclose(out, ref, atol=1e-5, rtol=1e-5), \
        f"max abs err {jnp.max(jnp.abs(out - ref))}"
    print("KERNEL_OK")
</pallas_src>

<mosaic_0001>
module attributes {stable_mosaic.version = 11 : i64} {
  func.func @_cosine_distance_kernel(%arg0: i32, %arg1: i32, %arg2: memref<8x32xf32, #tpu.memory_space<vmem>>, %arg3: memref<128x32xf32, #tpu.memory_space<vmem>>, %arg4: memref<8x1xf32, #tpu.memory_space<vmem>>, %arg5: memref<1x128xf32, #tpu.memory_space<vmem>>, %arg6: memref<8x128xf32, #tpu.memory_space<vmem>>) attributes {dimension_semantics = [#tpu.dimension_semantics<parallel>, #tpu.dimension_semantics<parallel>], iteration_bounds = array<i64: 1, 1>, scalar_prefetch = 0 : i64, scratch_operands = 0 : i64, tpu.core_type = #tpu.core_type<tc>, window_params = [{transform_indices = @transform_0, window_bounds = array<i64: 8, 32>}, {transform_indices = @transform_1, window_bounds = array<i64: 128, 32>}, {transform_indices = @transform_2, window_bounds = array<i64: 8, 1>}, {transform_indices = @transform_3, window_bounds = array<i64: 1, 128>}, {transform_indices = @transform_4, window_bounds = array<i64: 8, 128>}]} {
    %c0 = arith.constant 0 : index
    %c0_0 = arith.constant 0 : index
    %0 = vector.load %arg2[%c0, %c0_0] : memref<8x32xf32, #tpu.memory_space<vmem>>, vector<8x32xf32>
    %c0_1 = arith.constant 0 : index
    %c0_2 = arith.constant 0 : index
    %1 = vector.load %arg3[%c0_1, %c0_2] : memref<128x32xf32, #tpu.memory_space<vmem>>, vector<128x32xf32>
    %cst = arith.constant dense<0.000000e+00> : vector<8x128xf32>
    %2 = tpu.matmul %0, %1, %cst {dimension_numbers = #tpu.dot_dimension_numbers<[1], [1], [0], [0], [0, 0, 1, 0], [], []>} : vector<8x32xf32>, vector<128x32xf32>, vector<8x128xf32> -> vector<8x128xf32>
    %c0_3 = arith.constant 0 : index
    %c0_4 = arith.constant 0 : index
    %3 = vector.load %arg4[%c0_3, %c0_4] : memref<8x1xf32, #tpu.memory_space<vmem>>, vector<8x1xf32>
    %4 = vector.broadcast %3 : vector<8x1xf32> to vector<8x128xf32>
    %5 = arith.mulf %2, %4 : vector<8x128xf32>
    %c0_5 = arith.constant 0 : index
    %c0_6 = arith.constant 0 : index
    %6 = vector.load %arg5[%c0_5, %c0_6] : memref<1x128xf32, #tpu.memory_space<vmem>>, vector<1x128xf32>
    %7 = vector.broadcast %6 : vector<1x128xf32> to vector<8x128xf32>
    %8 = arith.mulf %5, %7 : vector<8x128xf32>
    %cst_7 = arith.constant 1.000000e+00 : f32
    %9 = vector.broadcast %cst_7 : f32 to vector<8x128xf32>
    %10 = arith.subf %9, %8 : vector<8x128xf32>
    %cst_8 = arith.constant 5.000000e-01 : f32
    %11 = vector.broadcast %cst_8 : f32 to vector<8x128xf32>
    %12 = arith.mulf %10, %11 : vector<8x128xf32>
    %c0_9 = arith.constant 0 : index
    %c0_10 = arith.constant 0 : index
    %13 = vector.load %arg6[%c0_9, %c0_10] : memref<8x128xf32, #tpu.memory_space<vmem>>, vector<8x128xf32>
    tpu.vector_store %arg6[%c0_9, %c0_10], %12 {strides = array<i32>} : memref<8x128xf32, #tpu.memory_space<vmem>>, vector<8x128xf32>,
    return
  }
  func.func @transform_0(%arg0: i32, %arg1: i32) -> (i32, i32) {
    %c0_i32 = arith.constant 0 : i32
    %c0_i32_0 = arith.constant 0 : i32
    return %arg0, %c0_i32 : i32, i32
  }
  func.func @transform_1(%arg0: i32, %arg1: i32) -> (i32, i32) {
    %c0_i32 = arith.constant 0 : i32
    %c0_i32_0 = arith.constant 0 : i32
    return %arg1, %c0_i32 : i32, i32
  }
  func.func @transform_2(%arg0: i32, %arg1: i32) -> (i32, i32) {
    %c0_i32 = arith.constant 0 : i32
    %c0_i32_0 = arith.constant 0 : i32
    return %arg0, %c0_i32 : i32, i32
  }
  func.func @transform_3(%arg0: i32, %arg1: i32) -> (i32, i32) {
    %c0_i32 = arith.constant 0 : i32
    %c0_i32_0 = arith.constant 0 : i32
    return %c0_i32, %arg1 : i32, i32
  }
  func.func @transform_4(%arg0: i32, %arg1: i32) -> (i32, i32) {
    %c0_i32 = arith.constant 0 : i32
    return %arg0, %arg1 : i32, i32
  }
}

</mosaic_0001>

<llo_original>
// kernel: tpu_custom_call.1
$region0: #{tpu_custom_call.1}
  #allocation0 [shape = 'u32[]', space=smem, size = 0x4, offset = 0x4, fixed_abs, tag = 'smem constant byte address 0x4 - core index']
  #allocation1 [shape = 'u32[144,128]{1,0:T(1,128)}', space=vmem, size = 0x12000, scoped, tag = 'internal scratch']
  %s0 = inlined_call_operand.vmem [shape: f32[8,32], index: 0, kind: input, shape index: {}]
  %s1 = inlined_call_operand.vmem [shape: f32[128,32], index: 1, kind: input, shape index: {}]
  %s2 = inlined_call_operand.vmem [shape: f32[8,1], index: 2, kind: input, shape index: {}]
  %s3 = inlined_call_operand.vmem [shape: f32[1,128], index: 3, kind: input, shape index: {}]
  %s4 = inlined_call_operand.hbm [shape: f32[8,128], index: 4, kind: output, shape index: {}]
  %s5 = sld [smem:[#allocation0]]
  $region26: #{tpu_custom_call.1} parent=0
    _
  %s7 = ssub.s32 1, %s5
  %s8 = scalar_select 0, %s7, %s5
  $region1: #{tpu_custom_call.1} parent=0
    #allocation2 [shape = 'u8[4096]{0}', space=vmem, size = 0x1000, scoped, tag = 'output window, operand 0, single buffered']
    #allocation3 [shape = 's32[1]{0}', space=sflag, size = 0x4, scoped, tag = 'scoped memory for tpu_custom_call.1']
    %9 = vsyncpa [#allocation3], 0
    // Predicated region
    $region2: #{tpu_custom_call.1} parent=1 // pred_check
      _
    $region3: #{tpu_custom_call.1} parent=1 // pred_check_branch
      %11 = sbr.rel (0) target = $region5
    $region4: #{tpu_custom_call.1} parent=1 // pred_region
      _
    $region5: #{tpu_custom_call.1} parent=1 // pred_fallthru
      _
    // Predicated region
    $region6: #{tpu_custom_call.1} parent=1 // pred_check
      _
    $region7: #{tpu_custom_call.1} parent=1 // pred_check_branch
      %13 = sbr.rel (0) target = $region9
    $region8: #{tpu_custom_call.1} parent=1 // pred_region
      _
    $region9: #{tpu_custom_call.1} parent=1 // pred_fallthru
      _
    // Predicated region
    $region10: #{tpu_custom_call.1} parent=1 // pred_check
      _
    $region11: #{tpu_custom_call.1} parent=1 // pred_check_branch
      %15 = sbr.rel (0) target = $region13
    $region12: #{tpu_custom_call.1} parent=1 // pred_region
      _
    $region13: #{tpu_custom_call.1} parent=1 // pred_fallthru
      _
    // Predicated region
    $region14: #{tpu_custom_call.1} parent=1 // pred_check
      _
    $region15: #{tpu_custom_call.1} parent=1 // pred_check_branch
      %17 = sbr.rel (0) target = $region17
    $region16: #{tpu_custom_call.1} parent=1 // pred_region
      _
    $region17: #{tpu_custom_call.1} parent=1 // pred_fallthru
      _
    %v18 = vld [vmem:[%s0] sm:$0xff]
    %v19 = vld [vmem:[%s1] sm:$0xff]
    %v20 = vld [vmem:[%s1 + $0x8] sm:$0xff]
    %v21 = vld [vmem:[%s1 + $0x10] sm:$0xff]
    %v22 = vld [vmem:[%s1 + $0x18] sm:$0xff]
    %v23 = vld [vmem:[%s1 + $0x20] sm:$0xff]
    %v24 = vld [vmem:[%s1 + $0x28] sm:$0xff]
    %v25 = vld [vmem:[%s1 + $0x30] sm:$0xff]
    %v26 = vld [vmem:[%s1 + $0x38] sm:$0xff]
    %v27 = vld [vmem:[%s1 + $0x40] sm:$0xff]
    %v28 = vld [vmem:[%s1 + $0x48] sm:$0xff]
    %v29 = vld [vmem:[%s1 + $0x50] sm:$0xff]
    %v30 = vld [vmem:[%s1 + $0x58] sm:$0xff]
    %v31 = vld [vmem:[%s1 + $0x60] sm:$0xff]
    %v32 = vld [vmem:[%s1 + $0x68] sm:$0xff]
    %v33 = vld [vmem:[%s1 + $0x70] sm:$0xff]
    %v34 = vld [vmem:[%s1 + $0x78] sm:$0xff]
    %vm35 = vcmask 261120
    %v37 = vsel %vm35, %v18, 0
    %v40 = vsel %vm35, %v19, 0
    %v43 = vsel %vm35, %v20, 0
    %v46 = vsel %vm35, %v21, 0
    %v49 = vsel %vm35, %v22, 0
    %v52 = vsel %vm35, %v23, 0
    %v55 = vsel %vm35, %v24, 0
    %v58 = vsel %vm35, %v25, 0
    %v61 = vsel %vm35, %v26, 0
    %v64 = vsel %vm35, %v27, 0
    %v67 = vsel %vm35, %v28, 0
    %v70 = vsel %vm35, %v29, 0
    %v73 = vsel %vm35, %v30, 0
    %v76 = vsel %vm35, %v31, 0
    %v79 = vsel %vm35, %v32, 0
    %v82 = vsel %vm35, %v33, 0
    %v85 = vsel %vm35, %v34, 0
    %87 = vmatprep.subr.mxu0 0.0
    %88 = vmatpush1.xpose.msra.mxu0 %v85
    %89 = vmatprep.subr.mxu0 0.0
    %90 = vmatpush1.xpose.msra.mxu0 %v82
    %91 = vmatprep.subr.mxu0 0.0
    %92 = vmatpush1.xpose.msra.mxu0 %v79
    %93 = vmatprep.subr.mxu0 0.0
    %94 = vmatpush1.xpose.msra.mxu0 %v76
    %95 = vmatprep.subr.mxu0 0.0
    %96 = vmatpush1.xpose.msra.mxu0 %v73
    %97 = vmatprep.subr.mxu0 0.0
    %98 = vmatpush1.xpose.msra.mxu0 %v70
    %99 = vmatprep.subr.mxu0 0.0
    %100 = vmatpush1.xpose.msra.mxu0 %v67
    %101 = vmatprep.subr.mxu0 0.0
    %102 = vmatpush1.xpose.msra.mxu0 %v64
    %103 = vmatprep.subr.mxu0 0.0
    %104 = vmatpush1.xpose.msra.mxu0 %v61
    %105 = vmatprep.subr.mxu0 0.0
    %106 = vmatpush1.xpose.msra.mxu0 %v58
    %107 = vmatprep.subr.mxu0 0.0
    %108 = vmatpush1.xpose.msra.mxu0 %v55
    %109 = vmatprep.subr.mxu0 0.0
    %110 = vmatpush1.xpose.msra.mxu0 %v52
    %111 = vmatprep.subr.mxu0 0.0
    %112 = vmatpush1.xpose.msra.mxu0 %v49
    %113 = vmatprep.subr.mxu0 0.0
    %114 = vmatpush1.xpose.msra.mxu0 %v46
    %115 = vmatprep.subr.mxu0 0.0
    %116 = vmatpush1.xpose.msra.mxu0 %v43
    %117 = vmatprep.subr.mxu0 0.0
    %118 = vmatpush1.xpose.msra.mxu0 %v40
    %119 = vmatprep.subr.mxu0 0.0
    %120 = vmatpush2.xpose.msra.mxu0 0.0
    %121 = vmatprep.subr.mxu0 0.0
    %122 = vmatpush2.xpose.msra.mxu0 0.0
    %123 = vmatprep.subr.mxu0 0.0
    %124 = vmatpush2.xpose.msra.mxu0 0.0
    %125 = vmatprep.subr.mxu0 0.0
    %126 = vmatpush2.xpose.msra.mxu0 0.0
    %127 = vmatprep.subr.mxu0 0.0
    %128 = vmatpush2.xpose.msra.mxu0 0.0
    %129 = vmatprep.subr.mxu0 0.0
    %130 = vmatpush2.xpose.msra.mxu0 0.0
    %131 = vmatprep.subr.mxu0 0.0
    %132 = vmatpush2.xpose.msra.mxu0 0.0
    %133 = vmatprep.subr.mxu0 0.0
    %134 = vmatpush2.xpose.msra.mxu0 0.0
    %135 = vmatprep.subr.mxu0 0.0
    %136 = vmatpush2.xpose.msra.mxu0 0.0
    %137 = vmatprep.subr.mxu0 0.0
    %138 = vmatpush2.xpose.msra.mxu0 0.0
    %139 = vmatprep.subr.mxu0 0.0
    %140 = vmatpush2.xpose.msra.mxu0 0.0
    %141 = vmatprep.subr.mxu0 0.0
    %142 = vmatpush2.xpose.msra.mxu0 0.0
    %143 = vmatprep.subr.mxu0 0.0
    %144 = vmatpush2.xpose.msra.mxu0 0.0
    %145 = vmatprep.subr.mxu0 0.0
    %146 = vmatpush2.xpose.msra.mxu0 0.0
    %147 = vmatprep.subr.mxu0 0.0
    %148 = vmatpush2.xpose.msra.mxu0 0.0
    %149 = vmatprep.subr.mxu0 0.0
    %150 = vmatpush2.xpose.msra.mxu0 0.0
    %151 = vmatprep.mubr.f32.mxu0 0.0
    %152 = vmatmul.mubr.f32.gmra.mxu0 %v37
    %v153 = vpop.f32.mrf.mxu0
    %v154 = vadd.f32 0.0, %v153
    %v155 = vpop.f32.mrf.mxu0
    %156 = vdwg.mxu0
    %v157 = vld [vmem:[%s2] sm:$0xff]
    %159 = vset.pattern.permute.xlu0 0
    %160 = vperm.xlu0 %159, %v157
    %v161 = vpop.permute.xlu0 %160
    %v163 = vmul.f32 %v154, %v161
    %v164 = vld [vmem:[%s3] sm:$0x1]
    %v166 = vlaneseq
    %v167 = vshrl.u32 %v166, 7
    %v168 = vsub.s32 0, %v167
    %v169 = vrot.slane %v164, %v168
    %v171 = vmul.f32 %v163, %v169
    %v172 = vsub.f32 1.0, %v171
    %v173 = vmul.f32 %v172, 0.5
    %174 = vst [vmem:[#allocation2] sm:$0xff] %v173
    // Predicated region
    $region18: #{tpu_custom_call.1} parent=1 // pred_check
      _
    $region19: #{tpu_custom_call.1} parent=1 // pred_check_branch
      %176 = sbr.rel (0) target = $region21
    $region20: #{tpu_custom_call.1} parent=1 // pred_region
      %s178 = ssub.s32 128, 128
      %179 = vsyncadd [#allocation3], %s178
      %s181 = sshll.u32 [#allocation2], 4
      %s182 = int_to_ptr.vmem [resolvable:$true] %s181
      %184 = dma.vmem_to_hbm [thread:$0]  %s182, 128, %s4, [#allocation3]
    $region21: #{tpu_custom_call.1} parent=1 // pred_fallthru
      _
    // Predicated region
    $region22: #{tpu_custom_call.1} parent=1 // pred_check
      _
    $region23: #{tpu_custom_call.1} parent=1 // pred_check_branch
      %186 = sbr.rel (0) target = $region25
    $region24: #{tpu_custom_call.1} parent=1 // pred_region
      %187 = dma.done [#allocation3], 128
    $region25: #{tpu_custom_call.1} parent=1 // pred_fallthru
      _
    %188 = vsyncpa [#allocation3], 1

</llo_original>
